<compile_context>
chip_gen: v7x
topology: tpu7x:2x2x1
jax: 0.10.0
libtpu: 0.0.40
codegen_flags: <defaults>
</compile_context>

<pallas_src>
import functools

import jax
import jax.numpy as jnp
import numpy as np
from jax.experimental import pallas as pl
from jax.experimental.pallas import tpu as pltpu


def _pick_tile(dim, target):
    """Largest tile <= target that divides dim (falls back to dim itself)."""
    if dim <= target:
        return dim
    t = target
    while dim % t:
        t -= 1
    return t


# --------------------------- fused QKV projection ----------------------------

def _qkv_kernel(x_ref, wq_ref, wk_ref, wv_ref, q_ref, k_ref, v_ref,
                acc_q, acc_k, acc_v):
    # x: [tm, tk]; w*: [tn, tk] (PyTorch [out, in] layout, contracted on axis 1).
    @pl.when(pl.program_id(2) == 0)
    def _init():
        acc_q[...] = jnp.zeros_like(acc_q)
        acc_k[...] = jnp.zeros_like(acc_k)
        acc_v[...] = jnp.zeros_like(acc_v)

    x = x_ref[...]                       # read once, reused for all three dots
    dn = (((1,), (1,)), ((), ()))        # contract x's K with w's axis 1 (no .T)
    acc_q[...] += jax.lax.dot_general(x, wq_ref[...], dn,
                                      preferred_element_type=jnp.float32)
    acc_k[...] += jax.lax.dot_general(x, wk_ref[...], dn,
                                      preferred_element_type=jnp.float32)
    acc_v[...] += jax.lax.dot_general(x, wv_ref[...], dn,
                                      preferred_element_type=jnp.float32)

    @pl.when(pl.program_id(2) == pl.num_programs(2) - 1)
    def _fin():
        q_ref[...] = acc_q[...].astype(q_ref.dtype)
        k_ref[...] = acc_k[...].astype(k_ref.dtype)
        v_ref[...] = acc_v[...].astype(v_ref.dtype)


def _fused_qkv_proj(x, wq, wk, wv, *, tm=256, tn=256, tk=256):
    # TODO(synk): on v6e/v7x, optionally cast x / weights to bf16 (keeping fp32
    # accumulation) behind a precision flag for MXU throughput.
    M, K = x.shape
    N = wq.shape[0]
    tm, tn, tk = _pick_tile(M, tm), _pick_tile(N, tn), _pick_tile(K, tk)
    w_spec = pl.BlockSpec((tn, tk), lambda i, j, k: (j, k))
    out_spec = pl.BlockSpec((tm, tn), lambda i, j, k: (i, j))
    return pl.pallas_call(
        _qkv_kernel,
        out_shape=tuple(jax.ShapeDtypeStruct((M, N), x.dtype) for _ in range(3)),
        grid=(M // tm, N // tn, K // tk),
        in_specs=[pl.BlockSpec((tm, tk), lambda i, j, k: (i, k)),
                  w_spec, w_spec, w_spec],
        out_specs=(out_spec, out_spec, out_spec),
        scratch_shapes=[pltpu.VMEM((tm, tn), jnp.float32)] * 3,
        compiler_params=pltpu.CompilerParams(
            dimension_semantics=("parallel", "parallel", "arbitrary")),
    )(x, wq, wk, wv)


# -------------------------------- out_proj -----------------------------------

def _out_proj_kernel(x_ref, w_ref, b_ref, o_ref, acc_ref):
    @pl.when(pl.program_id(2) == 0)
    def _init():
        acc_ref[...] = jnp.zeros_like(acc_ref)

    acc_ref[...] += jax.lax.dot_general(
        x_ref[...], w_ref[...], (((1,), (1,)), ((), ())),
        preferred_element_type=jnp.float32)

    @pl.when(pl.program_id(2) == pl.num_programs(2) - 1)
    def _fin():
        # Bias added once (not per-K-step), broadcast stays out of the hot loop.
        o_ref[...] = (acc_ref[...] + b_ref[...]).astype(o_ref.dtype)


def _out_proj(x, w, b, *, tm=256, tn=256, tk=256):
    M, K = x.shape
    N = w.shape[0]
    tm, tn, tk = _pick_tile(M, tm), _pick_tile(N, tn), _pick_tile(K, tk)
    return pl.pallas_call(
        _out_proj_kernel,
        out_shape=jax.ShapeDtypeStruct((M, N), x.dtype),
        grid=(M // tm, N // tn, K // tk),
        in_specs=[pl.BlockSpec((tm, tk), lambda i, j, k: (i, k)),
                  pl.BlockSpec((tn, tk), lambda i, j, k: (j, k)),
                  pl.BlockSpec((1, tn), lambda i, j, k: (0, j))],
        out_specs=pl.BlockSpec((tm, tn), lambda i, j, k: (i, j)),
        scratch_shapes=[pltpu.VMEM((tm, tn), jnp.float32)],
        compiler_params=pltpu.CompilerParams(
            dimension_semantics=("parallel", "parallel", "arbitrary")),
    )(x, w, b.reshape(1, N))


# -------------------------------- attention -----------------------------------

def _attn_kernel(q_ref, k_ref, v_ref, o_ref, *, head_dim, heads_per_block):
    # Blocks are [1, S, heads_per_block * head_dim] in merged-head [B,S,E] layout.
    S = q_ref.shape[1]
    q = q_ref[0].astype(jnp.float32)
    k = k_ref[0].astype(jnp.float32)
    v = v_ref[0]

    # Causal mask built once per block (hoisted out of the per-head loop).
    row = jax.lax.broadcasted_iota(jnp.int32, (S, S), 0)
    col = jax.lax.broadcasted_iota(jnp.int32, (S, S), 1)
    causal = col <= row                         # no past -> q_len == k_len
    mask_value = jnp.finfo(jnp.float32).min     # torch.finfo(fp32).min fill

    outs = []
    for h in range(heads_per_block):            # static unroll over heads
        lo = h * head_dim
        qh = q[:, lo:lo + head_dim]
        kh = k[:, lo:lo + head_dim]
        vh = v[:, lo:lo + head_dim]

        # Q @ K^T without materializing a transpose of K (contract on D).
        scores = jax.lax.dot_general(qh, kh, (((1,), (1,)), ((), ())),
                                     preferred_element_type=jnp.float32)
        scores = jnp.where(causal, scores, mask_value)   # NO 1/sqrt(d): GPT-Neo
        scores = scores - jnp.max(scores, axis=-1, keepdims=True)
        p = jnp.exp(scores)
        denom = jnp.sum(p, axis=-1, keepdims=True)
        p = (p * pl.reciprocal(denom, approx=False)).astype(vh.dtype)
        outs.append(jnp.dot(p, vh, preferred_element_type=jnp.float32))

    # Single lane-dense write back in merged-head layout (no merge transpose).
    o_ref[0] = jnp.concatenate(outs, axis=-1).astype(o_ref.dtype)


def _heads_per_block(num_heads, head_dim):
    # Smallest head group whose combined lane width is a multiple of 128
    # (lane-dense stores / full MXU lanes); fall back to all heads (full E).
    for hb in range(1, num_heads + 1):
        if num_heads % hb == 0 and (hb * head_dim) % 128 == 0:
            return hb
    return num_heads


def _attention(q, k, v, num_heads):
    B, S, E = q.shape
    D = E // num_heads
    hb = _heads_per_block(num_heads, D)
    num_groups = num_heads // hb
    spec = pl.BlockSpec((1, S, hb * D), lambda b, g: (b, 0, g))
    kernel = functools.partial(_attn_kernel, head_dim=D, heads_per_block=hb)
    # TODO(synk): for long sequences (esp. v7x 64 MiB VMEM) switch to
    # flash-style kv tiling (q-block grid axis + online-softmax m/l scratch)
    # instead of materializing the full SxS score tile per head.
    return pl.pallas_call(
        kernel,
        out_shape=jax.ShapeDtypeStruct((B, S, E), q.dtype),
        grid=(B, num_groups),
        in_specs=[spec, spec, spec],
        out_specs=spec,
        compiler_params=pltpu.CompilerParams(
            dimension_semantics=("parallel", "parallel")),
    )(q, k, v)


# ------------------------------- forward pass ---------------------------------

def gpt_neo_self_attention(hidden_states, params, num_heads):
    """hidden_states: [B, S, E] float32. Returns attn_output [B, S, E]."""
    B, S, E = hidden_states.shape
    x2d = hidden_states.reshape(B * S, E)            # free reshape

    # Fused QKV projection: one pallas_call, three outputs, weights consumed
    # in PyTorch [out, in] layout (no host-side transpose, no column slices).
    q2d, k2d, v2d = _fused_qkv_proj(x2d, params["wq"], params["wk"], params["wv"])

    # No head split/merge transposes: attention consumes [B, S, E] directly.
    q = q2d.reshape(B, S, E)
    k = k2d.reshape(B, S, E)
    v = v2d.reshape(B, S, E)

    attn = _attention(q, k, v, num_heads)            # [B, S, E] merged layout

    out2d = _out_proj(attn.reshape(B * S, E), params["wo"], params["bo"])
    return out2d.reshape(B, S, E)


# ----------------------------- reference (JAX) --------------------------------

def reference(hidden_states, params, num_heads):
    B, S, E = hidden_states.shape
    D = E // num_heads
    q = hidden_states @ params["wq"].T
    k = hidden_states @ params["wk"].T
    v = hidden_states @ params["wv"].T

    def split(t):
        return t.reshape(B, S, num_heads, D).transpose(0, 2, 1, 3)

    q, k, v = split(q), split(k), split(v)
    scores = jnp.einsum("bhqd,bhkd->bhqk", q.astype(jnp.float32), k.astype(jnp.float32))
    causal = jnp.tril(jnp.ones((S, S), dtype=bool))[None, None]
    scores = jnp.where(causal, scores, jnp.finfo(jnp.float32).min)
    p = jax.nn.softmax(scores, axis=-1).astype(v.dtype)
    o = jnp.einsum("bhqk,bhkd->bhqd", p, v)
    o = o.transpose(0, 2, 1, 3).reshape(B, S, E)
    return o @ params["wo"].T + params["bo"]


# ----------------------------------- main --------------------------------------

if __name__ == "__main__":
    # Small config implied by the module: hidden=32, heads=4, head_dim=8, seq=8.
    B, S, E, H = 2, 8, 32, 4

    key = jax.random.PRNGKey(0)
    k_x, k_q, k_k, k_v, k_o, k_b = jax.random.split(key, 6)

    x = jax.random.normal(k_x, (B, S, E), dtype=jnp.float32)
    params = {
        # PyTorch nn.Linear weight shape is [out_features, in_features].
        "wq": jax.random.normal(k_q, (E, E), dtype=jnp.float32) * 0.05,
        "wk": jax.random.normal(k_k, (E, E), dtype=jnp.float32) * 0.05,
        "wv": jax.random.normal(k_v, (E, E), dtype=jnp.float32) * 0.05,
        "wo": jax.random.normal(k_o, (E, E), dtype=jnp.float32) * 0.05,
        "bo": jax.random.normal(k_b, (E,), dtype=jnp.float32) * 0.05,
    }

    out = gpt_neo_self_attention(x, params, H)
    out = jax.block_until_ready(out)

    ref = reference(x, params, H)
    np.testing.assert_allclose(np.asarray(out), np.asarray(ref), rtol=1e-4, atol=1e-4)

    print("KERNEL_OK")
</pallas_src>

<mosaic_0001>
module attributes {stable_mosaic.version = 11 : i64} {
  func.func @_qkv_kernel(%arg0: i32, %arg1: i32, %arg2: i32, %arg3: memref<16x32xf32, #tpu.memory_space<vmem>>, %arg4: memref<32x32xf32, #tpu.memory_space<vmem>>, %arg5: memref<32x32xf32, #tpu.memory_space<vmem>>, %arg6: memref<32x32xf32, #tpu.memory_space<vmem>>, %arg7: memref<16x32xf32, #tpu.memory_space<vmem>>, %arg8: memref<16x32xf32, #tpu.memory_space<vmem>>, %arg9: memref<16x32xf32, #tpu.memory_space<vmem>>, %arg10: memref<16x32xf32, #tpu.memory_space<vmem>>, %arg11: memref<16x32xf32, #tpu.memory_space<vmem>>, %arg12: memref<16x32xf32, #tpu.memory_space<vmem>>) attributes {dimension_semantics = [#tpu.dimension_semantics<parallel>, #tpu.dimension_semantics<parallel>, #tpu.dimension_semantics<arbitrary>], iteration_bounds = array<i64: 1, 1, 1>, scalar_prefetch = 0 : i64, scratch_operands = 3 : i64, tpu.core_type = #tpu.core_type<tc>, window_params = [{transform_indices = @transform_0, window_bounds = array<i64: 16, 32>}, {transform_indices = @transform_1, window_bounds = array<i64: 32, 32>}, {transform_indices = @transform_2, window_bounds = array<i64: 32, 32>}, {transform_indices = @transform_3, window_bounds = array<i64: 32, 32>}, {transform_indices = @transform_4, window_bounds = array<i64: 16, 32>}, {transform_indices = @transform_5, window_bounds = array<i64: 16, 32>}, {transform_indices = @transform_6, window_bounds = array<i64: 16, 32>}]} {
    %c0_i32 = arith.constant 0 : i32
    %0 = arith.cmpi eq, %arg2, %c0_i32 : i32
    %1 = arith.extui %0 : i1 to i32
    %c0_i32_0 = arith.constant 0 : i32
    %2 = arith.cmpi ne, %1, %c0_i32_0 : i32
    scf.if %2 {
      %cst_24 = arith.constant 0.000000e+00 : f32
      %22 = vector.broadcast %cst_24 : f32 to vector<16x32xf32>
      %c0_25 = arith.constant 0 : index
      %c0_26 = arith.constant 0 : index
      %23 = vector.load %arg10[%c0_25, %c0_26] : memref<16x32xf32, #tpu.memory_space<vmem>>, vector<16x32xf32>
      tpu.vector_store %arg10[%c0_25, %c0_26], %22 {strides = array<i32>} : memref<16x32xf32, #tpu.memory_space<vmem>>, vector<16x32xf32>,
      %cst_27 = arith.constant 0.000000e+00 : f32
      %24 = vector.broadcast %cst_27 : f32 to vector<16x32xf32>
      %c0_28 = arith.constant 0 : index
      %c0_29 = arith.constant 0 : index
      %25 = vector.load %arg11[%c0_28, %c0_29] : memref<16x32xf32, #tpu.memory_space<vmem>>, vector<16x32xf32>
      tpu.vector_store %arg11[%c0_28, %c0_29], %24 {strides = array<i32>} : memref<16x32xf32, #tpu.memory_space<vmem>>, vector<16x32xf32>,
      %cst_30 = arith.constant 0.000000e+00 : f32
      %26 = vector.broadcast %cst_30 : f32 to vector<16x32xf32>
      %c0_31 = arith.constant 0 : index
      %c0_32 = arith.constant 0 : index
      %27 = vector.load %arg12[%c0_31, %c0_32] : memref<16x32xf32, #tpu.memory_space<vmem>>, vector<16x32xf32>
      tpu.vector_store %arg12[%c0_31, %c0_32], %26 {strides = array<i32>} : memref<16x32xf32, #tpu.memory_space<vmem>>, vector<16x32xf32>,
    } else {
    }
    %c0 = arith.constant 0 : index
    %c0_1 = arith.constant 0 : index
    %3 = vector.load %arg3[%c0, %c0_1] : memref<16x32xf32, #tpu.memory_space<vmem>>, vector<16x32xf32>
    %c0_2 = arith.constant 0 : index
    %c0_3 = arith.constant 0 : index
    %4 = vector.load %arg10[%c0_2, %c0_3] : memref<16x32xf32, #tpu.memory_space<vmem>>, vector<16x32xf32>
    %c0_4 = arith.constant 0 : index
    %c0_5 = arith.constant 0 : index
    %5 = vector.load %arg4[%c0_4, %c0_5] : memref<32x32xf32, #tpu.memory_space<vmem>>, vector<32x32xf32>
    %cst = arith.constant dense<0.000000e+00> : vector<16x32xf32>
    %6 = tpu.matmul %3, %5, %cst {dimension_numbers = #tpu.dot_dimension_numbers<[1], [1], [0], [0], [0, 0, 1, 0], [], []>} : vector<16x32xf32>, vector<32x32xf32>, vector<16x32xf32> -> vector<16x32xf32>
    %7 = arith.addf %4, %6 : vector<16x32xf32>
    %c0_6 = arith.constant 0 : index
    %c0_7 = arith.constant 0 : index
    %8 = vector.load %arg10[%c0_6, %c0_7] : memref<16x32xf32, #tpu.memory_space<vmem>>, vector<16x32xf32>
    tpu.vector_store %arg10[%c0_6, %c0_7], %7 {strides = array<i32>} : memref<16x32xf32, #tpu.memory_space<vmem>>, vector<16x32xf32>,
    %c0_8 = arith.constant 0 : index
    %c0_9 = arith.constant 0 : index
    %9 = vector.load %arg11[%c0_8, %c0_9] : memref<16x32xf32, #tpu.memory_space<vmem>>, vector<16x32xf32>
    %c0_10 = arith.constant 0 : index
    %c0_11 = arith.constant 0 : index
    %10 = vector.load %arg5[%c0_10, %c0_11] : memref<32x32xf32, #tpu.memory_space<vmem>>, vector<32x32xf32>
    %cst_12 = arith.constant dense<0.000000e+00> : vector<16x32xf32>
    %11 = tpu.matmul %3, %10, %cst_12 {dimension_numbers = #tpu.dot_dimension_numbers<[1], [1], [0], [0], [0, 0, 1, 0], [], []>} : vector<16x32xf32>, vector<32x32xf32>, vector<16x32xf32> -> vector<16x32xf32>
    %12 = arith.addf %9, %11 : vector<16x32xf32>
    %c0_13 = arith.constant 0 : index
    %c0_14 = arith.constant 0 : index
    %13 = vector.load %arg11[%c0_13, %c0_14] : memref<16x32xf32, #tpu.memory_space<vmem>>, vector<16x32xf32>
    tpu.vector_store %arg11[%c0_13, %c0_14], %12 {strides = array<i32>} : memref<16x32xf32, #tpu.memory_space<vmem>>, vector<16x32xf32>,
    %c0_15 = arith.constant 0 : index
    %c0_16 = arith.constant 0 : index
    %14 = vector.load %arg12[%c0_15, %c0_16] : memref<16x32xf32, #tpu.memory_space<vmem>>, vector<16x32xf32>
    %c0_17 = arith.constant 0 : index
    %c0_18 = arith.constant 0 : index
    %15 = vector.load %arg6[%c0_17, %c0_18] : memref<32x32xf32, #tpu.memory_space<vmem>>, vector<32x32xf32>
    %cst_19 = arith.constant dense<0.000000e+00> : vector<16x32xf32>
    %16 = tpu.matmul %3, %15, %cst_19 {dimension_numbers = #tpu.dot_dimension_numbers<[1], [1], [0], [0], [0, 0, 1, 0], [], []>} : vector<16x32xf32>, vector<32x32xf32>, vector<16x32xf32> -> vector<16x32xf32>
    %17 = arith.addf %14, %16 : vector<16x32xf32>
    %c0_20 = arith.constant 0 : index
    %c0_21 = arith.constant 0 : index
    %18 = vector.load %arg12[%c0_20, %c0_21] : memref<16x32xf32, #tpu.memory_space<vmem>>, vector<16x32xf32>
    tpu.vector_store %arg12[%c0_20, %c0_21], %17 {strides = array<i32>} : memref<16x32xf32, #tpu.memory_space<vmem>>, vector<16x32xf32>,
    %c0_i32_22 = arith.constant 0 : i32
    %19 = arith.cmpi eq, %arg2, %c0_i32_22 : i32
    %20 = arith.extui %19 : i1 to i32
    %c0_i32_23 = arith.constant 0 : i32
    %21 = arith.cmpi ne, %20, %c0_i32_23 : i32
    scf.if %21 {
      %c0_24 = arith.constant 0 : index
      %c0_25 = arith.constant 0 : index
      %22 = vector.load %arg10[%c0_24, %c0_25] : memref<16x32xf32, #tpu.memory_space<vmem>>, vector<16x32xf32>
      %c0_26 = arith.constant 0 : index
      %c0_27 = arith.constant 0 : index
      %23 = vector.load %arg7[%c0_26, %c0_27] : memref<16x32xf32, #tpu.memory_space<vmem>>, vector<16x32xf32>
      tpu.vector_store %arg7[%c0_26, %c0_27], %22 {strides = array<i32>} : memref<16x32xf32, #tpu.memory_space<vmem>>, vector<16x32xf32>,
      %c0_28 = arith.constant 0 : index
      %c0_29 = arith.constant 0 : index
      %24 = vector.load %arg11[%c0_28, %c0_29] : memref<16x32xf32, #tpu.memory_space<vmem>>, vector<16x32xf32>
      %c0_30 = arith.constant 0 : index
      %c0_31 = arith.constant 0 : index
      %25 = vector.load %arg8[%c0_30, %c0_31] : memref<16x32xf32, #tpu.memory_space<vmem>>, vector<16x32xf32>
      tpu.vector_store %arg8[%c0_30, %c0_31], %24 {strides = array<i32>} : memref<16x32xf32, #tpu.memory_space<vmem>>, vector<16x32xf32>,
      %c0_32 = arith.constant 0 : index
      %c0_33 = arith.constant 0 : index
      %26 = vector.load %arg12[%c0_32, %c0_33] : memref<16x32xf32, #tpu.memory_space<vmem>>, vector<16x32xf32>
      %c0_34 = arith.constant 0 : index
      %c0_35 = arith.constant 0 : index
      %27 = vector.load %arg9[%c0_34, %c0_35] : memref<16x32xf32, #tpu.memory_space<vmem>>, vector<16x32xf32>
      tpu.vector_store %arg9[%c0_34, %c0_35], %26 {strides = array<i32>} : memref<16x32xf32, #tpu.memory_space<vmem>>, vector<16x32xf32>,
    } else {
    }
    return
  }
  func.func @transform_0(%arg0: i32, %arg1: i32, %arg2: i32) -> (i32, i32) {
    %c0_i32 = arith.constant 0 : i32
    return %arg0, %arg2 : i32, i32
  }
  func.func @transform_1(%arg0: i32, %arg1: i32, %arg2: i32) -> (i32, i32) {
    %c0_i32 = arith.constant 0 : i32
    return %arg1, %arg2 : i32, i32
  }
  func.func @transform_2(%arg0: i32, %arg1: i32, %arg2: i32) -> (i32, i32) {
    %c0_i32 = arith.constant 0 : i32
    return %arg1, %arg2 : i32, i32
  }
  func.func @transform_3(%arg0: i32, %arg1: i32, %arg2: i32) -> (i32, i32) {
    %c0_i32 = arith.constant 0 : i32
    return %arg1, %arg2 : i32, i32
  }
  func.func @transform_4(%arg0: i32, %arg1: i32, %arg2: i32) -> (i32, i32) {
    %c0_i32 = arith.constant 0 : i32
    return %arg0, %arg1 : i32, i32
  }
  func.func @transform_5(%arg0: i32, %arg1: i32, %arg2: i32) -> (i32, i32) {
    %c0_i32 = arith.constant 0 : i32
    return %arg0, %arg1 : i32, i32
  }
  func.func @transform_6(%arg0: i32, %arg1: i32, %arg2: i32) -> (i32, i32) {
    %c0_i32 = arith.constant 0 : i32
    return %arg0, %arg1 : i32, i32
  }
}

</mosaic_0001>

<llo_original>
// kernel: tpu_custom_call.1
$region0: #{tpu_custom_call.1}
  #allocation0 [shape = 'u32[]', space=smem, size = 0x4, offset = 0x4, fixed_abs, tag = 'smem constant byte address 0x4 - core index']
  #allocation1 [shape = 'u32[144,128]{1,0:T(1,128)}', space=vmem, size = 0x12000, scoped, tag = 'internal scratch']
  #allocation2 [shape = 'f32[16,32]{1,0:T(8,128)}', space=vmem, size = 0x2000, scoped, tag = 'scratch operand']
  #allocation3 [shape = 'f32[16,32]{1,0:T(8,128)}', space=vmem, size = 0x2000, scoped, tag = 'scratch operand']
  #allocation4 [shape = 'f32[16,32]{1,0:T(8,128)}', space=vmem, size = 0x2000, scoped, tag = 'scratch operand']
  %s0 = inlined_call_operand.hbm [shape: f32[16,32], index: 0, kind: input, shape index: {}]
  %s1 = inlined_call_operand.hbm [shape: f32[32,32], index: 1, kind: input, shape index: {}]
  %s2 = inlined_call_operand.hbm [shape: f32[32,32], index: 2, kind: input, shape index: {}]
  %s3 = inlined_call_operand.hbm [shape: f32[32,32], index: 3, kind: input, shape index: {}]
  %s4 = inlined_call_operand.hbm [shape: f32[16,32], index: 4, kind: output, shape index: {0}]
  %s5 = inlined_call_operand.hbm [shape: f32[16,32], index: 5, kind: output, shape index: {1}]
  %s6 = inlined_call_operand.hbm [shape: f32[16,32], index: 6, kind: output, shape index: {2}]
  %7 = xla_tuple %s4, %s5, %s6
  %s8 = sld [smem:[#allocation0]]
  $region66: #{tpu_custom_call.1} parent=0
    _
  %s10 = ssub.s32 1, %s8
  %s11 = scalar_select 0, %s10, %s8
  $region1: #{tpu_custom_call.1} parent=0
    #allocation5 [shape = 'u8[8192]{0}', space=vmem, size = 0x2000, scoped, tag = 'input window, operand 0, single buffered']
    #allocation6 [shape = 's32[1]{0}', space=sflag, size = 0x4, scoped, tag = 'scoped memory for tpu_custom_call.1']
    #allocation7 [shape = 's32[1]{0}', space=sflag, size = 0x4, scoped, tag = 'scoped memory for tpu_custom_call.1']
    #allocation8 [shape = 'u8[16384]{0}', space=vmem, size = 0x4000, scoped, tag = 'input window, operand 1, single buffered']
    #allocation9 [shape = 's32[1]{0}', space=sflag, size = 0x4, scoped, tag = 'scoped memory for tpu_custom_call.1']
    #allocation10 [shape = 'u8[16384]{0}', space=vmem, size = 0x4000, scoped, tag = 'input window, operand 2, single buffered']
    #allocation11 [shape = 'u8[16384]{0}', space=vmem, size = 0x4000, scoped, tag = 'input window, operand 3, single buffered']
    #allocation12 [shape = 's32[1]{0}', space=sflag, size = 0x4, scoped, tag = 'scoped memory for tpu_custom_call.1']
    #allocation13 [shape = 'u8[8192]{0}', space=vmem, size = 0x2000, scoped, tag = 'output window, operand 0, single buffered']
    #allocation14 [shape = 'u8[8192]{0}', space=vmem, size = 0x2000, scoped, tag = 'output window, operand 1, single buffered']
    #allocation15 [shape = 's32[1]{0}', space=sflag, size = 0x4, scoped, tag = 'scoped memory for tpu_custom_call.1']
    #allocation16 [shape = 'u8[8192]{0}', space=vmem, size = 0x2000, scoped, tag = 'output window, operand 2, single buffered']
    %12 = vsyncpa [#allocation6], 0
    %13 = vsyncpa [#allocation9], 0
    %14 = vsyncpa [#allocation12], 0
    %15 = vsyncpa [#allocation7], 0
    %16 = vsyncpa [#allocation15], 0
    // Predicated region
    $region2: #{tpu_custom_call.1} parent=1 // pred_check
      _
    $region3: #{tpu_custom_call.1} parent=1 // pred_check_branch
      %18 = sbr.rel (0) target = $region5
    $region4: #{tpu_custom_call.1} parent=1 // pred_region
      %s20 = ssub.s32 256, 256
      %21 = vsyncadd [#allocation6], %s20
      %s22 = sshll.u32 [#allocation5], 4
      %s23 = int_to_ptr.vmem [resolvable:$true] %s22
      %28 = dma.hbm_to_vmem [thread:$0]  %s0, 256, %s23, [#allocation6], 128, 128, 8
    $region5: #{tpu_custom_call.1} parent=1 // pred_fallthru
      _
    // Predicated region
    $region6: #{tpu_custom_call.1} parent=1 // pred_check
      _
    $region7: #{tpu_custom_call.1} parent=1 // pred_check_branch
      %30 = sbr.rel (0) target = $region9
    $region8: #{tpu_custom_call.1} parent=1 // pred_region
      %s32 = ssub.s32 512, 512
      %33 = vsyncadd [#allocation9], %s32
      %s34 = sshll.u32 [#allocation8], 4
      %s35 = int_to_ptr.vmem [resolvable:$true] %s34
      %40 = dma.hbm_to_vmem [thread:$0]  %s1, 512, %s35, [#allocation9], 128, 128, 8
    $region9: #{tpu_custom_call.1} parent=1 // pred_fallthru
      _
    // Predicated region
    $region10: #{tpu_custom_call.1} parent=1 // pred_check
      _
    $region11: #{tpu_custom_call.1} parent=1 // pred_check_branch
      %42 = sbr.rel (0) target = $region13
    $region12: #{tpu_custom_call.1} parent=1 // pred_region
      %s44 = ssub.s32 512, 512
      %45 = vsyncadd [#allocation9], %s44
      %s46 = sshll.u32 [#allocation10], 4
      %s47 = int_to_ptr.vmem [resolvable:$true] %s46
      %52 = dma.hbm_to_vmem [thread:$0]  %s2, 512, %s47, [#allocation9], 128, 128, 8
    $region13: #{tpu_custom_call.1} parent=1 // pred_fallthru
      _
    // Predicated region
    $region14: #{tpu_custom_call.1} parent=1 // pred_check
      _
    $region15: #{tpu_custom_call.1} parent=1 // pred_check_branch
      %54 = sbr.rel (0) target = $region17
    $region16: #{tpu_custom_call.1} parent=1 // pred_region
      %s56 = ssub.s32 512, 512
      %57 = vsyncadd [#allocation12], %s56
      %s58 = sshll.u32 [#allocation11], 4
      %s59 = int_to_ptr.vmem [resolvable:$true] %s58
      %64 = dma.hbm_to_vmem [thread:$0]  %s3, 512, %s59, [#allocation12], 128, 128, 8
    $region17: #{tpu_custom_call.1} parent=1 // pred_fallthru
      _
    // Predicated region
    $region18: #{tpu_custom_call.1} parent=1 // pred_check
      _
    $region19: #{tpu_custom_call.1} parent=1 // pred_check_branch
      %66 = sbr.rel (0) target = $region21
    $region20: #{tpu_custom_call.1} parent=1 // pred_region
      %67 = dma.done [#allocation6], 256
    $region21: #{tpu_custom_call.1} parent=1 // pred_fallthru
      _
    // Predicated region
    $region22: #{tpu_custom_call.1} parent=1 // pred_check
      _
    $region23: #{tpu_custom_call.1} parent=1 // pred_check_branch
      %69 = sbr.rel (0) target = $region25
    $region24: #{tpu_custom_call.1} parent=1 // pred_region
      %70 = dma.done [#allocation9], 512
    $region25: #{tpu_custom_call.1} parent=1 // pred_fallthru
      _
    // Predicated region
    $region26: #{tpu_custom_call.1} parent=1 // pred_check
      _
    $region27: #{tpu_custom_call.1} parent=1 // pred_check_branch
      %72 = sbr.rel (0) target = $region29
    $region28: #{tpu_custom_call.1} parent=1 // pred_region
      %73 = dma.done [#allocation9], 512
    $region29: #{tpu_custom_call.1} parent=1 // pred_fallthru
      _
    // Predicated region
    $region30: #{tpu_custom_call.1} parent=1 // pred_check
      _
    $region31: #{tpu_custom_call.1} parent=1 // pred_check_branch
      %75 = sbr.rel (0) target = $region33
    $region32: #{tpu_custom_call.1} parent=1 // pred_region
      %76 = dma.done [#allocation12], 512
    $region33: #{tpu_custom_call.1} parent=1 // pred_fallthru
      _
    %p77 = scmp.eq.s32.totalorder 0, 0
    // Predicated region
    $region34: #{tpu_custom_call.1} parent=1 // pred_check
      %p78 = pneg %p77
    $region35: #{tpu_custom_call.1} parent=1 // pred_check_branch
      %80 = sbr.rel (%p78) target = $region37
    $region36: #{tpu_custom_call.1} parent=1 // pred_region
      %vm81 = vcmask 261120
      %82 = vst.msk [vmem:[#allocation2] sm:$0xff] %vm81, 0.0
      %83 = vst.msk [vmem:[#allocation2 + $0x8] sm:$0xff] %vm81, 0.0
      %84 = vst.msk [vmem:[#allocation3] sm:$0xff] %vm81, 0.0
      %85 = vst.msk [vmem:[#allocation3 + $0x8] sm:$0xff] %vm81, 0.0
      %86 = vst.msk [vmem:[#allocation4] sm:$0xff] %vm81, 0.0
      %87 = vst.msk [vmem:[#allocation4 + $0x8] sm:$0xff] %vm81, 0.0
    $region37: #{tpu_custom_call.1} parent=1 // pred_fallthru
      _
    %v88 = vld [vmem:[#allocation5] sm:$0xff]
    %v89 = vld [vmem:[#allocation5 + $0x8] sm:$0xff]
    %v90 = vld [vmem:[#allocation2] sm:$0xff]
    %v91 = vld [vmem:[#allocation2 + $0x8] sm:$0xff]
    %v92 = vld [vmem:[#allocation8] sm:$0xff]
    %v93 = vld [vmem:[#allocation8 + $0x8] sm:$0xff]
    %v94 = vld [vmem:[#allocation8 + $0x10] sm:$0xff]
    %v95 = vld [vmem:[#allocation8 + $0x18] sm:$0xff]
    %vm96 = vcmask 261120
    %v98 = vsel %vm96, %v88, 0
    %v101 = vsel %vm96, %v89, 0
    %v104 = vsel %vm96, %v92, 0
    %v107 = vsel %vm96, %v93, 0
    %v110 = vsel %vm96, %v94, 0
    %v113 = vsel %vm96, %v95, 0
    %115 = vmatprep.subr.mxu0 0.0
    %116 = vmatpush1.xpose.msra.mxu0 %v104
    %117 = vmatprep.subr.mxu0 0.0
    %118 = vmatpush1.xpose.msra.mxu0 %v107
    %119 = vmatprep.subr.mxu0 0.0
    %120 = vmatpush1.xpose.msra.mxu0 %v110
    %121 = vmatprep.subr.mxu0 0.0
    %122 = vmatpush1.xpose.msra.mxu0 %v113
    %123 = vmatprep.subr.mxu0 0.0
    %124 = vmatpush1.xpose.msra.mxu0 0.0
    %125 = vmatprep.subr.mxu0 0.0
    %126 = vmatpush1.xpose.msra.mxu0 0.0
    %127 = vmatprep.subr.mxu0 0.0
    %128 = vmatpush1.xpose.msra.mxu0 0.0
    %129 = vmatprep.subr.mxu0 0.0
    %130 = vmatpush1.xpose.msra.mxu0 0.0
    %131 = vmatprep.subr.mxu0 0.0
    %132 = vmatpush1.xpose.msra.mxu0 0.0
    %133 = vmatprep.subr.mxu0 0.0
    %134 = vmatpush1.xpose.msra.mxu0 0.0
    %135 = vmatprep.subr.mxu0 0.0
    %136 = vmatpush1.xpose.msra.mxu0 0.0
    %137 = vmatprep.subr.mxu0 0.0
    %138 = vmatpush1.xpose.msra.mxu0 0.0
    %139 = vmatprep.subr.mxu0 0.0
    %140 = vmatpush1.xpose.msra.mxu0 0.0
    %141 = vmatprep.subr.mxu0 0.0
    %142 = vmatpush1.xpose.msra.mxu0 0.0
    %143 = vmatprep.subr.mxu0 0.0
    %144 = vmatpush1.xpose.msra.mxu0 0.0
    %145 = vmatprep.subr.mxu0 0.0
    %146 = vmatpush1.xpose.msra.mxu0 0.0
    %147 = vmatprep.subr.mxu0 0.0
    %148 = vmatpush1.xpose.msra.mxu0 0.0
    %149 = vmatprep.subr.mxu0 0.0
    %150 = vmatpush1.xpose.msra.mxu0 0.0
    %151 = vmatprep.subr.mxu0 0.0
    %152 = vmatpush1.xpose.msra.mxu0 0.0
    %153 = vmatprep.subr.mxu0 0.0
    %154 = vmatpush1.xpose.msra.mxu0 0.0
    %155 = vmatprep.subr.mxu0 0.0
    %156 = vmatpush1.xpose.msra.mxu0 0.0
    %157 = vmatprep.subr.mxu0 0.0
    %158 = vmatpush1.xpose.msra.mxu0 0.0
    %159 = vmatprep.subr.mxu0 0.0
    %160 = vmatpush1.xpose.msra.mxu0 0.0
    %161 = vmatprep.subr.mxu0 0.0
    %162 = vmatpush1.xpose.msra.mxu0 0.0
    %163 = vmatprep.subr.mxu0 0.0
    %164 = vmatpush1.xpose.msra.mxu0 0.0
    %165 = vmatprep.subr.mxu0 0.0
    %166 = vmatpush1.xpose.msra.mxu0 0.0
    %167 = vmatprep.subr.mxu0 0.0
    %168 = vmatpush1.xpose.msra.mxu0 0.0
    %169 = vmatprep.subr.mxu0 0.0
    %170 = vmatpush1.xpose.msra.mxu0 0.0
    %171 = vmatprep.subr.mxu0 0.0
    %172 = vmatpush1.xpose.msra.mxu0 0.0
    %173 = vmatprep.subr.mxu0 0.0
    %174 = vmatpush1.xpose.msra.mxu0 0.0
    %175 = vmatprep.subr.mxu0 0.0
    %176 = vmatpush1.xpose.msra.mxu0 0.0
    %177 = vmatprep.subr.mxu0 0.0
    %178 = vmatpush1.xpose.msra.mxu0 0.0
    %179 = vmatprep.mubr.f32.mxu0 0.0
    %180 = vmatmul.mubr.f32.gmra.mrb[0].mxu0 %v98
    %v181 = vpop.f32.mrb[0].mxu0
    %v182 = vadd.f32 0.0, %v181
    %v183 = vpop.f32.mrb[0].mxu0
    %184 = vmatprep.mubr.f32.mxu0 0.0
    %185 = vmatmul.mubr.f32.gmra.mrb[0].mxu0 %v101
    %v186 = vpop.f32.mrb[0].mxu0
    %v187 = vadd.f32 0.0, %v186
    %v188 = vpop.f32.mrb[0].mxu0
    %189 = vdwg.mxu0
    %v190 = vadd.f32 %v90, %v182
    %v191 = vadd.f32 %v91, %v187
    %192 = vst.msk [vmem:[#allocation2] sm:$0xff] %vm96, %v190
    %193 = vst.msk [vmem:[#allocation2 + $0x8] sm:$0xff] %vm96, %v191
    %v194 = vld [vmem:[#allocation3] sm:$0xff]
    %v195 = vld [vmem:[#allocation3 + $0x8] sm:$0xff]
    %v196 = vld [vmem:[#allocation10] sm:$0xff]
    %v197 = vld [vmem:[#allocation10 + $0x8] sm:$0xff]
    %v198 = vld [vmem:[#allocation10 + $0x10] sm:$0xff]
    %v199 = vld [vmem:[#allocation10 + $0x18] sm:$0xff]
    %v201 = vsel %vm96, %v196, 0
    %v204 = vsel %vm96, %v197, 0
    %v207 = vsel %vm96, %v198, 0
    %v210 = vsel %vm96, %v199, 0
    %212 = vmatprep.subr.mxu0 0.0
    %213 = vmatpush1.xpose.msra.mxu0 %v201
    %214 = vmatprep.subr.mxu0 0.0
    %215 = vmatpush1.xpose.msra.mxu0 %v204
    %216 = vmatprep.subr.mxu0 0.0
    %217 = vmatpush1.xpose.msra.mxu0 %v207
    %218 = vmatprep.subr.mxu0 0.0
    %219 = vmatpush1.xpose.msra.mxu0 %v210
    %220 = vmatprep.subr.mxu0 0.0
    %221 = vmatpush1.xpose.msra.mxu0 0.0
    %222 = vmatprep.subr.mxu0 0.0
    %223 = vmatpush1.xpose.msra.mxu0 0.0
    %224 = vmatprep.subr.mxu0 0.0
    %225 = vmatpush1.xpose.msra.mxu0 0.0
    %226 = vmatprep.subr.mxu0 0.0
    %227 = vmatpush1.xpose.msra.mxu0 0.0
    %228 = vmatprep.subr.mxu0 0.0
    %229 = vmatpush1.xpose.msra.mxu0 0.0
    %230 = vmatprep.subr.mxu0 0.0
    %231 = vmatpush1.xpose.msra.mxu0 0.0
    %232 = vmatprep.subr.mxu0 0.0
    %233 = vmatpush1.xpose.msra.mxu0 0.0
    %234 = vmatprep.subr.mxu0 0.0
    %235 = vmatpush1.xpose.msra.mxu0 0.0
    %236 = vmatprep.subr.mxu0 0.0
    %237 = vmatpush1.xpose.msra.mxu0 0.0
    %238 = vmatprep.subr.mxu0 0.0
    %239 = vmatpush1.xpose.msra.mxu0 0.0
    %240 = vmatprep.subr.mxu0 0.0
    %241 = vmatpush1.xpose.msra.mxu0 0.0
    %242 = vmatprep.subr.mxu0 0.0
    %243 = vmatpush1.xpose.msra.mxu0 0.0
    %244 = vmatprep.subr.mxu0 0.0
    %245 = vmatpush1.xpose.msra.mxu0 0.0
    %246 = vmatprep.subr.mxu0 0.0
    %247 = vmatpush1.xpose.msra.mxu0 0.0
    %248 = vmatprep.subr.mxu0 0.0
    %249 = vmatpush1.xpose.msra.mxu0 0.0
    %250 = vmatprep.subr.mxu0 0.0
    %251 = vmatpush1.xpose.msra.mxu0 0.0
    %252 = vmatprep.subr.mxu0 0.0
    %253 = vmatpush1.xpose.msra.mxu0 0.0
    %254 = vmatprep.subr.mxu0 0.0
    %255 = vmatpush1.xpose.msra.mxu0 0.0
    %256 = vmatprep.subr.mxu0 0.0
    %257 = vmatpush1.xpose.msra.mxu0 0.0
    %258 = vmatprep.subr.mxu0 0.0
    %259 = vmatpush1.xpose.msra.mxu0 0.0
    %260 = vmatprep.subr.mxu0 0.0
    %261 = vmatpush1.xpose.msra.mxu0 0.0
    %262 = vmatprep.subr.mxu0 0.0
    %263 = vmatpush1.xpose.msra.mxu0 0.0
    %264 = vmatprep.subr.mxu0 0.0
    %265 = vmatpush1.xpose.msra.mxu0 0.0
    %266 = vmatprep.subr.mxu0 0.0
    %267 = vmatpush1.xpose.msra.mxu0 0.0
    %268 = vmatprep.subr.mxu0 0.0
    %269 = vmatpush1.xpose.msra.mxu0 0.0
    %270 = vmatprep.subr.mxu0 0.0
    %271 = vmatpush1.xpose.msra.mxu0 0.0
    %272 = vmatprep.subr.mxu0 0.0
    %273 = vmatpush1.xpose.msra.mxu0 0.0
    %274 = vmatprep.subr.mxu0 0.0
    %275 = vmatpush1.xpose.msra.mxu0 0.0
    %276 = vmatprep.mubr.f32.mxu0 0.0
    %277 = vmatmul.mubr.f32.gmra.mrb[0].mxu0 %v98
    %v278 = vpop.f32.mrb[0].mxu0
    %v279 = vadd.f32 0.0, %v278
    %v280 = vpop.f32.mrb[0].mxu0
    %281 = vmatprep.mubr.f32.mxu0 0.0
    %282 = vmatmul.mubr.f32.gmra.mrb[0].mxu0 %v101
    %v283 = vpop.f32.mrb[0].mxu0
    %v284 = vadd.f32 0.0, %v283
    %v285 = vpop.f32.mrb[0].mxu0
    %286 = vdwg.mxu0
    %v287 = vadd.f32 %v194, %v279
    %v288 = vadd.f32 %v195, %v284
    %289 = vst.msk [vmem:[#allocation3] sm:$0xff] %vm96, %v287
    %290 = vst.msk [vmem:[#allocation3 + $0x8] sm:$0xff] %vm96, %v288
    %v291 = vld [vmem:[#allocation4] sm:$0xff]
    %v292 = vld [vmem:[#allocation4 + $0x8] sm:$0xff]
    %v293 = vld [vmem:[#allocation11] sm:$0xff]
    %v294 = vld [vmem:[#allocation11 + $0x8] sm:$0xff]
    %v295 = vld [vmem:[#allocation11 + $0x10] sm:$0xff]
    %v296 = vld [vmem:[#allocation11 + $0x18] sm:$0xff]
    %v298 = vsel %vm96, %v293, 0
    %v301 = vsel %vm96, %v294, 0
    %v304 = vsel %vm96, %v295, 0
    %v307 = vsel %vm96, %v296, 0
    %309 = vmatprep.subr.mxu0 0.0
    %310 = vmatpush1.xpose.msra.mxu0 %v298
    %311 = vmatprep.subr.mxu0 0.0
    %312 = vmatpush1.xpose.msra.mxu0 %v301
    %313 = vmatprep.subr.mxu0 0.0
    %314 = vmatpush1.xpose.msra.mxu0 %v304
    %315 = vmatprep.subr.mxu0 0.0
    %316 = vmatpush1.xpose.msra.mxu0 %v307
    %317 = vmatprep.subr.mxu0 0.0
    %318 = vmatpush1.xpose.msra.mxu0 0.0
    %319 = vmatprep.subr.mxu0 0.0
    %320 = vmatpush1.xpose.msra.mxu0 0.0
    %321 = vmatprep.subr.mxu0 0.0
    %322 = vmatpush1.xpose.msra.mxu0 0.0
    %323 = vmatprep.subr.mxu0 0.0
    %324 = vmatpush1.xpose.msra.mxu0 0.0
    %325 = vmatprep.subr.mxu0 0.0
    %326 = vmatpush1.xpose.msra.mxu0 0.0
    %327 = vmatprep.subr.mxu0 0.0
    %328 = vmatpush1.xpose.msra.mxu0 0.0
    %329 = vmatprep.subr.mxu0 0.0
    %330 = vmatpush1.xpose.msra.mxu0 0.0
    %331 = vmatprep.subr.mxu0 0.0
    %332 = vmatpush1.xpose.msra.mxu0 0.0
    %333 = vmatprep.subr.mxu0 0.0
    %334 = vmatpush1.xpose.msra.mxu0 0.0
    %335 = vmatprep.subr.mxu0 0.0
    %336 = vmatpush1.xpose.msra.mxu0 0.0
    %337 = vmatprep.subr.mxu0 0.0
    %338 = vmatpush1.xpose.msra.mxu0 0.0
    %339 = vmatprep.subr.mxu0 0.0
    %340 = vmatpush1.xpose.msra.mxu0 0.0
    %341 = vmatprep.subr.mxu0 0.0
    %342 = vmatpush1.xpose.msra.mxu0 0.0
    %343 = vmatprep.subr.mxu0 0.0
    %344 = vmatpush1.xpose.msra.mxu0 0.0
    %345 = vmatprep.subr.mxu0 0.0
    %346 = vmatpush1.xpose.msra.mxu0 0.0
    %347 = vmatprep.subr.mxu0 0.0
    %348 = vmatpush1.xpose.msra.mxu0 0.0
    %349 = vmatprep.subr.mxu0 0.0
    %350 = vmatpush1.xpose.msra.mxu0 0.0
    %351 = vmatprep.subr.mxu0 0.0
    %352 = vmatpush1.xpose.msra.mxu0 0.0
    %353 = vmatprep.subr.mxu0 0.0
    %354 = vmatpush1.xpose.msra.mxu0 0.0
    %355 = vmatprep.subr.mxu0 0.0
    %356 = vmatpush1.xpose.msra.mxu0 0.0
    %357 = vmatprep.subr.mxu0 0.0
    %358 = vmatpush1.xpose.msra.mxu0 0.0
    %359 = vmatprep.subr.mxu0 0.0
    %360 = vmatpush1.xpose.msra.mxu0 0.0
    %361 = vmatprep.subr.mxu0 0.0
    %362 = vmatpush1.xpose.msra.mxu0 0.0
    %363 = vmatprep.subr.mxu0 0.0
    %364 = vmatpush1.xpose.msra.mxu0 0.0
    %365 = vmatprep.subr.mxu0 0.0
    %366 = vmatpush1.xpose.msra.mxu0 0.0
    %367 = vmatprep.subr.mxu0 0.0
    %368 = vmatpush1.xpose.msra.mxu0 0.0
    %369 = vmatprep.subr.mxu0 0.0
    %370 = vmatpush1.xpose.msra.mxu0 0.0
    %371 = vmatprep.subr.mxu0 0.0
    %372 = vmatpush1.xpose.msra.mxu0 0.0
    %373 = vmatprep.mubr.f32.mxu0 0.0
    %374 = vmatmul.mubr.f32.gmra.mrb[0].mxu0 %v98
    %v375 = vpop.f32.mrb[0].mxu0
    %v376 = vadd.f32 0.0, %v375
    %v377 = vpop.f32.mrb[0].mxu0
    %378 = vmatprep.mubr.f32.mxu0 0.0
    %379 = vmatmul.mubr.f32.gmra.mrb[0].mxu0 %v101
    %v380 = vpop.f32.mrb[0].mxu0
    %v381 = vadd.f32 0.0, %v380
    %v382 = vpop.f32.mrb[0].mxu0
    %383 = vdwg.mxu0
    %v384 = vadd.f32 %v291, %v376
    %v385 = vadd.f32 %v292, %v381
    %386 = vst.msk [vmem:[#allocation4] sm:$0xff] %vm96, %v384
    %387 = vst.msk [vmem:[#allocation4 + $0x8] sm:$0xff] %vm96, %v385
    // Predicated region
    $region38: #{tpu_custom_call.1} parent=1 // pred_check
      %p388 = pneg %p77
    $region39: #{tpu_custom_call.1} parent=1 // pred_check_branch
      %390 = sbr.rel (%p388) target = $region41
    $region40: #{tpu_custom_call.1} parent=1 // pred_region
      %v391 = vld [vmem:[#allocation2] sm:$0xff]
      %v392 = vld [vmem:[#allocation2 + $0x8] sm:$0xff]
      %393 = vst.msk [vmem:[#allocation13] sm:$0xff] %vm96, %v391
      %394 = vst.msk [vmem:[#allocation13 + $0x8] sm:$0xff] %vm96, %v392
      %v395 = vld [vmem:[#allocation3] sm:$0xff]
      %v396 = vld [vmem:[#allocation3 + $0x8] sm:$0xff]
      %397 = vst.msk [vmem:[#allocation14] sm:$0xff] %vm96, %v395
      %398 = vst.msk [vmem:[#allocation14 + $0x8] sm:$0xff] %vm96, %v396
      %v399 = vld [vmem:[#allocation4] sm:$0xff]
      %v400 = vld [vmem:[#allocation4 + $0x8] sm:$0xff]
      %401 = vst.msk [vmem:[#allocation16] sm:$0xff] %vm96, %v399
      %402 = vst.msk [vmem:[#allocation16 + $0x8] sm:$0xff] %vm96, %v400
    $region41: #{tpu_custom_call.1} parent=1 // pred_fallthru
      _
    // Predicated region
    $region42: #{tpu_custom_call.1} parent=1 // pred_check
      _
    $region43: #{tpu_custom_call.1} parent=1 // pred_check_branch
      %404 = sbr.rel (0) target = $region45
    $region44: #{tpu_custom_call.1} parent=1 // pred_region
      %s406 = ssub.s32 256, 256
      %407 = vsyncadd [#allocation7], %s406
      %s408 = sshll.u32 [#allocation13], 4
      %s409 = int_to_ptr.vmem [resolvable:$true] %s408
      %414 = dma.vmem_to_hbm [thread:$0]  %s409, 256, %s4, [#allocation7], 128, 128, 8
    $region45: #{tpu_custom_call.1} parent=1 // pred_fallthru
      _
    // Predicated region
    $region46: #{tpu_custom_call.1} parent=1 // pred_check
      _
    $region47: #{tpu_custom_call.1} parent=1 // pred_check_branch
      %416 = sbr.rel (0) target = $region49
    $region48: #{tpu_custom_call.1} parent=1 // pred_region
      %s418 = ssub.s32 256, 256
      %419 = vsyncadd [#allocation15], %s418
      %s420 = sshll.u32 [#allocation14], 4
      %s421 = int_to_ptr.vmem [resolvable:$true] %s420
      %426 = dma.vmem_to_hbm [thread:$0]  %s421, 256, %s5, [#allocation15], 128, 128, 8
    $region49: #{tpu_custom_call.1} parent=1 // pred_fallthru
      _
    // Predicated region
    $region50: #{tpu_custom_call.1} parent=1 // pred_check
      _
    $region51: #{tpu_custom_call.1} parent=1 // pred_check_branch
      %428 = sbr.rel (0) target = $region53
    $region52: #{tpu_custom_call.1} parent=1 // pred_region
      %s430 = ssub.s32 256, 256
      %431 = vsyncadd [#allocation15], %s430
      %s432 = sshll.u32 [#allocation16], 4
      %s433 = int_to_ptr.vmem [resolvable:$true] %s432
      %438 = dma.vmem_to_hbm [thread:$0]  %s433, 256, %s6, [#allocation15], 128, 128, 8
    $region53: #{tpu_custom_call.1} parent=1 // pred_fallthru
      _
    // Predicated region
    $region54: #{tpu_custom_call.1} parent=1 // pred_check
      _
    $region55: #{tpu_custom_call.1} parent=1 // pred_check_branch
      %440 = sbr.rel (0) target = $region57
    $region56: #{tpu_custom_call.1} parent=1 // pred_region
      %441 = dma.done [#allocation7], 256
    $region57: #{tpu_custom_call.1} parent=1 // pred_fallthru
      _
    // Predicated region
    $region58: #{tpu_custom_call.1} parent=1 // pred_check
      _
    $region59: #{tpu_custom_call.1} parent=1 // pred_check_branch
      %443 = sbr.rel (0) target = $region61
    $region60: #{tpu_custom_call.1} parent=1 // pred_region
      %444 = dma.done [#allocation15], 256
    $region61: #{tpu_custom_call.1} parent=1 // pred_fallthru
      _
    // Predicated region
    $region62: #{tpu_custom_call.1} parent=1 // pred_check
      _
    $region63: #{tpu_custom_call.1} parent=1 // pred_check_branch
      %446 = sbr.rel (0) target = $region65
    $region64: #{tpu_custom_call.1} parent=1 // pred_region
      %447 = dma.done [#allocation15], 256
    $region65: #{tpu_custom_call.1} parent=1 // pred_fallthru
      _
    %448 = vsyncpa [#allocation6], 1
    %449 = vsyncpa [#allocation9], 1
    %450 = vsyncpa [#allocation12], 1
    %451 = vsyncpa [#allocation7], 1
    %452 = vsyncpa [#allocation15], 1

</llo_original>
